<compile_context>
chip_gen: v5e
topology: v5e:2x2
jax: 0.10.0
libtpu: 0.0.40
codegen_flags: <defaults>
</compile_context>

<pallas_src>
import jax
import jax.numpy as jnp
from jax.experimental import pallas as pl
from jax.experimental.pallas import tpu as pltpu


def _lof_display_kernel(cls_ref, ctn_ref, lof_ref, out_ref):
    # cls_ref: (C, T)  ctn_ref: (1, T)  lof_ref: (L, T)  out_ref: (4, T)
    C = cls_ref.shape[0]
    L = lof_ref.shape[0]

    p = jax.nn.sigmoid(cls_ref[...].astype(jnp.float32))        # (C, T)
    ctn = jax.nn.sigmoid(ctn_ref[...].astype(jnp.float32))      # (1, T)

    # One-pass max + first-argmax over the (small, static) channel axis.
    run_max = p[0:1, :]                                          # (1, T)
    run_idx = jnp.zeros_like(run_max)
    for c in range(1, C):
        pc = p[c:c + 1, :]
        better = pc > run_max        # strict > keeps first-maximal-index tie-break
        run_max = jnp.where(better, pc, run_max)
        run_idx = jnp.where(better, jnp.float32(c), run_idx)

    # version == 2 LOF decode: round(sigmoid(x)) == 1  iff  x > 0
    # (sigmoid(0) = 0.5 rounds half-to-even to 0, matching strict '>').
    lof = lof_ref[...].astype(jnp.float32)                       # (L, T)
    lof_val = (lof[0:1, :] > 0).astype(jnp.float32)
    for k in range(1, L):
        lof_val = lof_val + (lof[k:k + 1, :] > 0).astype(jnp.float32) * (2.0 ** k)

    out_ref[0:1, :] = jnp.sqrt(run_max * ctn)                    # box score
    out_ref[1:2, :] = run_idx + 1.0                              # cls id (as float)
    out_ref[2:3, :] = ctn                                        # centerness
    out_ref[3:4, :] = lof_val                                    # decoded lof tag


def lof_display_forward(box_cls_list, box_reg_list, centerness_list, lof_tag_list,
                        num_chunks=2):
    """Mirrors LOFDispaly.forward (version == 2) across all FPN levels in ONE
    pallas_call. box_regression is unused by the original compute; accepted for
    signature fidelity. Returns a list of (score, cls_id, centerness, lof) maps
    per level.
    # TODO(synk): matplotlib figure/axes rendering has no Pallas equivalent (display only).
    """
    del box_reg_list
    C = box_cls_list[0].shape[1]
    L = lof_tag_list[0].shape[1]
    hw = [(bc.shape[2], bc.shape[3]) for bc in box_cls_list]
    sizes = [h * w for (h, w) in hw]
    P = sum(sizes)

    # Pad the pixel axis so every chunk's lane width is a multiple of 128.
    chunk_mult = 128 * num_chunks
    P_pad = ((P + chunk_mult - 1) // chunk_mult) * chunk_mult
    pad = P_pad - P
    T = P_pad // num_chunks

    # Flatten each level (1, ch, H, W) -> (ch, H*W) and concat along pixels.
    cls_flat = jnp.concatenate([bc[0].reshape(C, -1) for bc in box_cls_list], axis=1)
    ctn_flat = jnp.concatenate([ct[0].reshape(1, -1) for ct in centerness_list], axis=1)
    lof_flat = jnp.concatenate([lt[0].reshape(L, -1) for lt in lof_tag_list], axis=1)
    if pad:
        cls_flat = jnp.pad(cls_flat, ((0, 0), (0, pad)))
        ctn_flat = jnp.pad(ctn_flat, ((0, 0), (0, pad)))
        lof_flat = jnp.pad(lof_flat, ((0, 0), (0, pad)))

    out = pl.pallas_call(
        _lof_display_kernel,
        out_shape=jax.ShapeDtypeStruct((4, P_pad), jnp.float32),
        grid=(num_chunks,),
        in_specs=[
            pl.BlockSpec((C, T), lambda i: (0, i)),
            pl.BlockSpec((1, T), lambda i: (0, i)),
            pl.BlockSpec((L, T), lambda i: (0, i)),
        ],
        out_specs=pl.BlockSpec((4, T), lambda i: (0, i)),
        compiler_params=pltpu.CompilerParams(
            dimension_semantics=("parallel",)),
    )(cls_flat, ctn_flat, lof_flat)

    # Recover per-level maps from the packed slab.
    results = []
    off = 0
    for (h, w), sz in zip(hw, sizes):
        blk = out[:, off:off + sz]
        score = blk[0].reshape(h, w)
        cls_id = blk[1].reshape(h, w).astype(jnp.int32)   # exact: values in 1..C
        ctn = blk[2].reshape(h, w)
        lof = blk[3].reshape(h, w)
        results.append((score, cls_id, ctn, lof))
        off += sz
    return results


def _reference_single_level(box_cls, centerness, lof_tag):
    cls = jax.nn.sigmoid(box_cls[0].astype(jnp.float32))             # (C, H, W)
    ctn = jax.nn.sigmoid(centerness[0, 0].astype(jnp.float32))       # (H, W)
    max_cls = jnp.max(cls, axis=0)
    cls_id = (jnp.argmax(cls, axis=0) + 1).astype(jnp.int32)
    score = jnp.sqrt(max_cls * ctn)
    bits = jnp.round(jax.nn.sigmoid(lof_tag[0].astype(jnp.float32)))
    factor = jnp.exp2(jnp.arange(bits.shape[0], dtype=jnp.float32))[:, None, None]
    lof = jnp.sum(bits * factor, axis=0)
    return score, cls_id, ctn, lof


if __name__ == "__main__":
    key = jax.random.PRNGKey(0)
    N = 1            # module squeezes batch -> N must be 1
    C = 4            # num_classes - 1 channels in box_cls
    L = 4            # num_lof
    level_hw = [(32, 32), (16, 16), (16, 16), (8, 8), (8, 8)]   # 5 FPN levels

    box_cls_list, box_reg_list, ctn_list, lof_list = [], [], [], []
    for (H, W) in level_hw:
        key, k1, k2, k3, k4 = jax.random.split(key, 5)
        box_cls_list.append(jax.random.normal(k1, (N, C, H, W), jnp.float32))
        box_reg_list.append(jax.random.normal(k2, (N, 4, H, W), jnp.float32))
        ctn_list.append(jax.random.normal(k3, (N, 1, H, W), jnp.float32))
        lof_list.append(jax.random.normal(k4, (N, L, H, W), jnp.float32))

    outs = lof_display_forward(box_cls_list, box_reg_list, ctn_list, lof_list)
    for o in outs:
        jax.block_until_ready(o)

    # correctness check vs. plain-JAX reference
    for (bc, ct, lt), (score, cls_id, ctn, lof) in zip(
            zip(box_cls_list, ctn_list, lof_list), outs):
        r_score, r_id, r_ctn, r_lof = _reference_single_level(bc, ct, lt)
        assert jnp.allclose(score, r_score, atol=1e-5, rtol=1e-5)
        assert jnp.array_equal(cls_id, r_id)
        assert jnp.allclose(ctn, r_ctn, atol=1e-5, rtol=1e-5)
        assert jnp.allclose(lof, r_lof, atol=1e-5, rtol=1e-5)

    print("KERNEL_OK")
</pallas_src>

<mosaic_0001>
module attributes {stable_mosaic.version = 11 : i64} {
  func.func @_lof_display_kernel(%arg0: i32, %arg1: memref<4x896xf32, #tpu.memory_space<vmem>>, %arg2: memref<1x896xf32, #tpu.memory_space<vmem>>, %arg3: memref<4x896xf32, #tpu.memory_space<vmem>>, %arg4: memref<4x896xf32, #tpu.memory_space<vmem>>) attributes {dimension_semantics = [#tpu.dimension_semantics<parallel>], iteration_bounds = array<i64: 2>, scalar_prefetch = 0 : i64, scratch_operands = 0 : i64, tpu.core_type = #tpu.core_type<tc>, window_params = [{transform_indices = @transform_0, window_bounds = array<i64: 4, 896>}, {transform_indices = @transform_1, window_bounds = array<i64: 1, 896>}, {transform_indices = @transform_2, window_bounds = array<i64: 4, 896>}, {transform_indices = @transform_3, window_bounds = array<i64: 4, 896>}]} {
    %c0 = arith.constant 0 : index
    %c0_0 = arith.constant 0 : index
    %0 = vector.load %arg1[%c0, %c0_0] : memref<4x896xf32, #tpu.memory_space<vmem>>, vector<4x896xf32>
    %1 = arith.negf %0 : vector<4x896xf32>
    %2 = math.exp %1 : vector<4x896xf32>
    %cst = arith.constant 1.000000e+00 : f32
    %3 = vector.broadcast %cst : f32 to vector<4x896xf32>
    %4 = arith.addf %3, %2 : vector<4x896xf32>
    %5 = arith.divf %3, %4 : vector<4x896xf32>
    %c0_1 = arith.constant 0 : index
    %c0_2 = arith.constant 0 : index
    %6 = vector.load %arg2[%c0_1, %c0_2] : memref<1x896xf32, #tpu.memory_space<vmem>>, vector<1x896xf32>
    %7 = arith.negf %6 : vector<1x896xf32>
    %8 = math.exp %7 : vector<1x896xf32>
    %cst_3 = arith.constant 1.000000e+00 : f32
    %9 = vector.broadcast %cst_3 : f32 to vector<1x896xf32>
    %10 = arith.addf %9, %8 : vector<1x896xf32>
    %11 = arith.divf %9, %10 : vector<1x896xf32>
    %12 = vector.extract_strided_slice %5 {offsets = [0, 0], sizes = [1, 896], strides = [1, 1]} : vector<4x896xf32> to vector<1x896xf32>
    %cst_4 = arith.constant 0.000000e+00 : f32
    %13 = vector.broadcast %cst_4 : f32 to vector<1x896xf32>
    %14 = vector.extract_strided_slice %5 {offsets = [1, 0], sizes = [1, 896], strides = [1, 1]} : vector<4x896xf32> to vector<1x896xf32>
    %15 = arith.cmpf ogt, %14, %12 : vector<1x896xf32>
    %16 = arith.select %15, %14, %12 : vector<1x896xi1>, vector<1x896xf32>
    %cst_5 = arith.constant 1.000000e+00 : f32
    %17 = vector.broadcast %cst_5 : f32 to vector<1x896xf32>
    %18 = arith.select %15, %17, %13 : vector<1x896xi1>, vector<1x896xf32>
    %19 = vector.extract_strided_slice %5 {offsets = [2, 0], sizes = [1, 896], strides = [1, 1]} : vector<4x896xf32> to vector<1x896xf32>
    %20 = arith.cmpf ogt, %19, %16 : vector<1x896xf32>
    %21 = arith.select %20, %19, %16 : vector<1x896xi1>, vector<1x896xf32>
    %cst_6 = arith.constant 2.000000e+00 : f32
    %22 = vector.broadcast %cst_6 : f32 to vector<1x896xf32>
    %23 = arith.select %20, %22, %18 : vector<1x896xi1>, vector<1x896xf32>
    %24 = vector.extract_strided_slice %5 {offsets = [3, 0], sizes = [1, 896], strides = [1, 1]} : vector<4x896xf32> to vector<1x896xf32>
    %25 = arith.cmpf ogt, %24, %21 : vector<1x896xf32>
    %26 = arith.select %25, %24, %21 : vector<1x896xi1>, vector<1x896xf32>
    %cst_7 = arith.constant 3.000000e+00 : f32
    %27 = vector.broadcast %cst_7 : f32 to vector<1x896xf32>
    %28 = arith.select %25, %27, %23 : vector<1x896xi1>, vector<1x896xf32>
    %c0_8 = arith.constant 0 : index
    %c0_9 = arith.constant 0 : index
    %29 = vector.load %arg3[%c0_8, %c0_9] : memref<4x896xf32, #tpu.memory_space<vmem>>, vector<4x896xf32>
    %30 = vector.extract_strided_slice %29 {offsets = [0, 0], sizes = [1, 896], strides = [1, 1]} : vector<4x896xf32> to vector<1x896xf32>
    %cst_10 = arith.constant 0.000000e+00 : f32
    %31 = vector.broadcast %cst_10 : f32 to vector<1x896xf32>
    %32 = arith.cmpf ogt, %30, %31 : vector<1x896xf32>
    %33 = arith.extui %32 : vector<1x896xi1> to vector<1x896xi32>
    %34 = arith.sitofp %33 : vector<1x896xi32> to vector<1x896xf32>
    %35 = vector.extract_strided_slice %29 {offsets = [1, 0], sizes = [1, 896], strides = [1, 1]} : vector<4x896xf32> to vector<1x896xf32>
    %cst_11 = arith.constant 0.000000e+00 : f32
    %36 = vector.broadcast %cst_11 : f32 to vector<1x896xf32>
    %37 = arith.cmpf ogt, %35, %36 : vector<1x896xf32>
    %38 = arith.extui %37 : vector<1x896xi1> to vector<1x896xi32>
    %39 = arith.sitofp %38 : vector<1x896xi32> to vector<1x896xf32>
    %cst_12 = arith.constant 2.000000e+00 : f32
    %40 = vector.broadcast %cst_12 : f32 to vector<1x896xf32>
    %41 = arith.mulf %39, %40 : vector<1x896xf32>
    %42 = arith.addf %34, %41 : vector<1x896xf32>
    %43 = vector.extract_strided_slice %29 {offsets = [2, 0], sizes = [1, 896], strides = [1, 1]} : vector<4x896xf32> to vector<1x896xf32>
    %cst_13 = arith.constant 0.000000e+00 : f32
    %44 = vector.broadcast %cst_13 : f32 to vector<1x896xf32>
    %45 = arith.cmpf ogt, %43, %44 : vector<1x896xf32>
    %46 = arith.extui %45 : vector<1x896xi1> to vector<1x896xi32>
    %47 = arith.sitofp %46 : vector<1x896xi32> to vector<1x896xf32>
    %cst_14 = arith.constant 4.000000e+00 : f32
    %48 = vector.broadcast %cst_14 : f32 to vector<1x896xf32>
    %49 = arith.mulf %47, %48 : vector<1x896xf32>
    %50 = arith.addf %42, %49 : vector<1x896xf32>
    %51 = vector.extract_strided_slice %29 {offsets = [3, 0], sizes = [1, 896], strides = [1, 1]} : vector<4x896xf32> to vector<1x896xf32>
    %cst_15 = arith.constant 0.000000e+00 : f32
    %52 = vector.broadcast %cst_15 : f32 to vector<1x896xf32>
    %53 = arith.cmpf ogt, %51, %52 : vector<1x896xf32>
    %54 = arith.extui %53 : vector<1x896xi1> to vector<1x896xi32>
    %55 = arith.sitofp %54 : vector<1x896xi32> to vector<1x896xf32>
    %cst_16 = arith.constant 8.000000e+00 : f32
    %56 = vector.broadcast %cst_16 : f32 to vector<1x896xf32>
    %57 = arith.mulf %55, %56 : vector<1x896xf32>
    %58 = arith.addf %50, %57 : vector<1x896xf32>
    %59 = arith.mulf %26, %11 : vector<1x896xf32>
    %60 = math.sqrt %59 : vector<1x896xf32>
    %c0_17 = arith.constant 0 : index
    %c0_18 = arith.constant 0 : index
    %61 = vector.load %arg4[%c0_17, %c0_18] : memref<4x896xf32, #tpu.memory_space<vmem>>, vector<1x896xf32>
    tpu.vector_store %arg4[%c0_17, %c0_18], %60 {strides = array<i32>} : memref<4x896xf32, #tpu.memory_space<vmem>>, vector<1x896xf32>,
    %cst_19 = arith.constant 1.000000e+00 : f32
    %62 = vector.broadcast %cst_19 : f32 to vector<1x896xf32>
    %63 = arith.addf %28, %62 : vector<1x896xf32>
    %c1 = arith.constant 1 : index
    %c0_20 = arith.constant 0 : index
    %64 = vector.load %arg4[%c1, %c0_20] : memref<4x896xf32, #tpu.memory_space<vmem>>, vector<1x896xf32>
    tpu.vector_store %arg4[%c1, %c0_20], %63 {strides = array<i32>} : memref<4x896xf32, #tpu.memory_space<vmem>>, vector<1x896xf32>,
    %c2 = arith.constant 2 : index
    %c0_21 = arith.constant 0 : index
    %65 = vector.load %arg4[%c2, %c0_21] : memref<4x896xf32, #tpu.memory_space<vmem>>, vector<1x896xf32>
    tpu.vector_store %arg4[%c2, %c0_21], %11 {strides = array<i32>} : memref<4x896xf32, #tpu.memory_space<vmem>>, vector<1x896xf32>,
    %c3 = arith.constant 3 : index
    %c0_22 = arith.constant 0 : index
    %66 = vector.load %arg4[%c3, %c0_22] : memref<4x896xf32, #tpu.memory_space<vmem>>, vector<1x896xf32>
    tpu.vector_store %arg4[%c3, %c0_22], %58 {strides = array<i32>} : memref<4x896xf32, #tpu.memory_space<vmem>>, vector<1x896xf32>,
    return
  }
  func.func @transform_0(%arg0: i32) -> (i32, i32) {
    %c0_i32 = arith.constant 0 : i32
    %c0_i32_0 = arith.constant 0 : i32
    return %c0_i32, %arg0 : i32, i32
  }
  func.func @transform_1(%arg0: i32) -> (i32, i32) {
    %c0_i32 = arith.constant 0 : i32
    %c0_i32_0 = arith.constant 0 : i32
    return %c0_i32, %arg0 : i32, i32
  }
  func.func @transform_2(%arg0: i32) -> (i32, i32) {
    %c0_i32 = arith.constant 0 : i32
    %c0_i32_0 = arith.constant 0 : i32
    return %c0_i32, %arg0 : i32, i32
  }
  func.func @transform_3(%arg0: i32) -> (i32, i32) {
    %c0_i32 = arith.constant 0 : i32
    %c0_i32_0 = arith.constant 0 : i32
    return %c0_i32, %arg0 : i32, i32
  }
}

</mosaic_0001>

<llo_original>
// kernel: tpu_custom_call.1
$region0: #{tpu_custom_call.1}
  #allocation0 [shape = 'u32[]', space=smem, size = 0x4, offset = 0x4, fixed_abs, tag = 'smem constant byte address 0x4 - core index']
  #allocation1 [shape = 'u32[72,128]{1,0:T(1,128)}', space=vmem, size = 0x9000, scoped, tag = 'internal scratch']
  %s0 = inlined_call_operand.hbm [shape: f32[4,1792], index: 0, kind: input, shape index: {}]
  %s1 = inlined_call_operand.hbm [shape: f32[1,1792], index: 1, kind: input, shape index: {}]
  %s2 = inlined_call_operand.hbm [shape: f32[4,1792], index: 2, kind: input, shape index: {}]
  %s3 = inlined_call_operand.hbm [shape: f32[4,1792], index: 3, kind: output, shape index: {}]
  %s4 = sld [smem:[#allocation0]]
  $region57: #{tpu_custom_call.1} parent=0
    _
  %s6 = ssub.s32 1, %s4
  %s7 = scalar_select 0, %s6, %s4
  $region1: #{tpu_custom_call.1} parent=0
    #allocation2 [shape = 'u8[28672]{0}', space=vmem, size = 0x7000, scoped, tag = 'input window, operand 0']
    #allocation3 [shape = 's32[2]{0}', space=sflag, size = 0x8, scoped, tag = 'scoped memory for tpu_custom_call.1']
    #allocation4 [shape = 's32[2]{0}', space=sflag, size = 0x8, scoped, tag = 'scoped memory for tpu_custom_call.1']
    #allocation5 [shape = 'u8[7168]{0}', space=vmem, size = 0x1c00, scoped, tag = 'input window, operand 1']
    #allocation6 [shape = 's32[2]{0}', space=sflag, size = 0x8, scoped, tag = 'scoped memory for tpu_custom_call.1']
    #allocation7 [shape = 'u8[28672]{0}', space=vmem, size = 0x7000, scoped, tag = 'input window, operand 2']
    #allocation8 [shape = 'u8[28672]{0}', space=vmem, size = 0x7000, scoped, tag = 'output window, operand 0']
    %8 = vsyncpa [#allocation3], 0
    %s9 = scalar_lea.sflag [#allocation3], 1
    %10 = vsyncpa %s9, 0
    %11 = vsyncpa [#allocation6], 0
    %s12 = scalar_lea.sflag [#allocation6], 1
    %13 = vsyncpa %s12, 0
    %14 = vsyncpa [#allocation4], 0
    %s15 = scalar_lea.sflag [#allocation4], 1
    %16 = vsyncpa %s15, 0
    loop: start=0, step=1, limit=4
    $region2: #{tpu_custom_call.1} parent=1 // loop_pre_header
      _
    $region3: #{tpu_custom_call.1} parent=1 // loop_header
      %s18 = sphi 0, %s22
      %p19 = scmp.ge.s32.totalorder %s18, 4
      %s28 = sphi 0, %s30
      %s31 = sphi 0, %s28
      %s32 = sphi 0, %s31
      %s48 = sphi 0, %s32
      %s54 = sphi 0, %s56
      %s57 = sphi 0, %s54
      %s58 = sphi 0, %s57
      %s74 = sphi 0, %s58
      %s80 = sphi 0, %s82
      %s83 = sphi 0, %s80
      %s84 = sphi 0, %s83
      %s100 = sphi 0, %s84
      %s106 = sphi 0, %s108
      %s109 = sphi 0, %s106
      %s110 = sphi 0, %s109
      %s126 = sphi 0, %s110
    $region4: #{tpu_custom_call.1} parent=1 // loop_header_branch
      %21 = sbr.rel (%p19) target = $region8
    $region5: #{tpu_custom_call.1} parent=1 // loop_body
      %s23 = ssub.s32 %s18, 1
      %s24 = ssub.s32 %s18, 2
      %s25 = sadd.s32 %s18, 1
      %s26 = ssub.s32 %s18, %s25
      %p27 = scmp.eq.s32.totalorder %s26, 0
      %s29 = sadd.s32 %s28, 1
      %s30 = scalar_select %p27, %s28, %s29
      %p33 = pneg %p27
      %p34 = scmp.eq.s32.totalorder %s18, 1
      %p35 = por %p33, %p34
      %p36 = scmp.ne.s32.totalorder %s28, %s31
      %p37 = scmp.eq.s32.totalorder %s18, 0
      %p38 = por %p36, %p37
      %p39 = scmp.ne.s32.totalorder %s28, %s31
      %p40 = scmp.eq.s32.totalorder %s23, 1
      %p41 = por %p39, %p40
      %p42 = scmp.ne.s32.totalorder %s31, %s32
      %p43 = scmp.eq.s32.totalorder %s23, 0
      %p44 = por %p42, %p43
      %p45 = scmp.ne.s32.totalorder %s31, %s32
      %p46 = scmp.eq.s32.totalorder %s24, 1
      %p47 = por %p45, %p46
      %p49 = scmp.ne.s32.totalorder %s32, %s48
      %p50 = scmp.eq.s32.totalorder %s24, 0
      %p51 = por %p49, %p50
      %s52 = ssub.s32 %s18, %s25
      %p53 = scmp.eq.s32.totalorder %s52, 0
      %s55 = sadd.s32 %s54, 1
      %s56 = scalar_select %p53, %s54, %s55
      %p59 = pneg %p53
      %p60 = scmp.eq.s32.totalorder %s18, 1
      %p61 = por %p59, %p60
      %p62 = scmp.ne.s32.totalorder %s54, %s57
      %p63 = scmp.eq.s32.totalorder %s18, 0
      %p64 = por %p62, %p63
      %p65 = scmp.ne.s32.totalorder %s54, %s57
      %p66 = scmp.eq.s32.totalorder %s23, 1
      %p67 = por %p65, %p66
      %p68 = scmp.ne.s32.totalorder %s57, %s58
      %p69 = scmp.eq.s32.totalorder %s23, 0
      %p70 = por %p68, %p69
      %p71 = scmp.ne.s32.totalorder %s57, %s58
      %p72 = scmp.eq.s32.totalorder %s24, 1
      %p73 = por %p71, %p72
      %p75 = scmp.ne.s32.totalorder %s58, %s74
      %p76 = scmp.eq.s32.totalorder %s24, 0
      %p77 = por %p75, %p76
      %s78 = ssub.s32 %s18, %s25
      %p79 = scmp.eq.s32.totalorder %s78, 0
      %s81 = sadd.s32 %s80, 1
      %s82 = scalar_select %p79, %s80, %s81
      %p85 = pneg %p79
      %p86 = scmp.eq.s32.totalorder %s18, 1
      %p87 = por %p85, %p86
      %p88 = scmp.ne.s32.totalorder %s80, %s83
      %p89 = scmp.eq.s32.totalorder %s18, 0
      %p90 = por %p88, %p89
      %p91 = scmp.ne.s32.totalorder %s80, %s83
      %p92 = scmp.eq.s32.totalorder %s23, 1
      %p93 = por %p91, %p92
      %p94 = scmp.ne.s32.totalorder %s83, %s84
      %p95 = scmp.eq.s32.totalorder %s23, 0
      %p96 = por %p94, %p95
      %p97 = scmp.ne.s32.totalorder %s83, %s84
      %p98 = scmp.eq.s32.totalorder %s24, 1
      %p99 = por %p97, %p98
      %p101 = scmp.ne.s32.totalorder %s84, %s100
      %p102 = scmp.eq.s32.totalorder %s24, 0
      %p103 = por %p101, %p102
      %s104 = ssub.s32 %s18, %s25
      %p105 = scmp.eq.s32.totalorder %s104, 0
      %s107 = sadd.s32 %s106, 1
      %s108 = scalar_select %p105, %s106, %s107
      %p111 = pneg %p105
      %p112 = scmp.eq.s32.totalorder %s18, 1
      %p113 = por %p111, %p112
      %p114 = scmp.ne.s32.totalorder %s106, %s109
      %p115 = scmp.eq.s32.totalorder %s18, 0
      %p116 = por %p114, %p115
      %p117 = scmp.ne.s32.totalorder %s106, %s109
      %p118 = scmp.eq.s32.totalorder %s23, 1
      %p119 = por %p117, %p118
      %p120 = scmp.ne.s32.totalorder %s109, %s110
      %p121 = scmp.eq.s32.totalorder %s23, 0
      %p122 = por %p120, %p121
      %p123 = scmp.ne.s32.totalorder %s109, %s110
      %p124 = scmp.eq.s32.totalorder %s24, 1
      %p125 = por %p123, %p124
      %p127 = scmp.ne.s32.totalorder %s110, %s126
      %p128 = scmp.eq.s32.totalorder %s24, 0
      %p129 = por %p127, %p128
      %p130 = scmp.le.s32.totalorder 1, %s18
      %p131 = scmp.lt.s32.totalorder %s18, 3
      %p132 = pnand %p130, %p131
      %p133 = pneg %p132
      // Predicated region
      $region9: #{tpu_custom_call.1} parent=5 // pred_check
        _
      $region10: #{tpu_custom_call.1} parent=5 // pred_check_branch
        %135 = sbr.rel (%p132) target = $region12
      $region11: #{tpu_custom_call.1} parent=5 // pred_region
        %s136 = ssub.s32 %s18, 1
      $region12: #{tpu_custom_call.1} parent=5 // pred_fallthru
        _
      %p137 = scmp.lt.s32.totalorder %s18, 2
      // Predicated region
      $region13: #{tpu_custom_call.1} parent=5 // pred_check
        %p138 = pneg %p137
      $region14: #{tpu_custom_call.1} parent=5 // pred_check_branch
        %140 = sbr.rel (%p138) target = $region16
      $region15: #{tpu_custom_call.1} parent=5 // pred_region
        // Predicated region
        $region17: #{tpu_custom_call.1} parent=15 // pred_check
          %p141 = pneg %p38
        $region18: #{tpu_custom_call.1} parent=15 // pred_check_branch
          %143 = sbr.rel (%p141) target = $region20
        $region19: #{tpu_custom_call.1} parent=15 // pred_region
          %s144 = sand.u32 %s28, 1
          %s145 = scalar_lea.sflag [#allocation3], %s144
          %s146 = sand.u32 %s28, 1
          %s147 = smul.addr %s146, 28
          %s148 = scalar_lea.vmem [#allocation2], %s147
          %s149 = smul.u32 7, %s18
          %151 = vsyncadd %s145, 0
          %s152 = smul.addr %s149, 4
          %s153 = scalar_lea.hbm %s0, %s152
          %s155 = sshll.u32 %s153, 4
          %s156 = int_to_ptr.hbm [resolvable:$true] %s155
          %s157 = sshll.u32 %s148, 4
          %s158 = int_to_ptr.vmem [resolvable:$true] %s157
          %160 = dma.hbm_to_vmem [thread:$0]  %s156, 448, %s158, %s145
        $region20: #{tpu_custom_call.1} parent=15 // pred_fallthru
          _
        // Predicated region
        $region21: #{tpu_custom_call.1} parent=15 // pred_check
          %p161 = pneg %p64
        $region22: #{tpu_custom_call.1} parent=15 // pred_check_branch
          %163 = sbr.rel (%p161) target = $region24
        $region23: #{tpu_custom_call.1} parent=15 // pred_region
          %s164 = sand.u32 %s18, 1
          %s165 = scalar_lea.sflag [#allocation6], %s164
          %s166 = sand.u32 %s54, 1
          %s167 = smul.addr %s166, 7
          %s168 = scalar_lea.vmem [#allocation5], %s167
          %s169 = smul.u32 7, %s18
          %171 = vsyncadd %s165, 0
          %s172 = scalar_lea.hbm %s1, %s169
          %s174 = sshll.u32 %s172, 4
          %s175 = int_to_ptr.hbm [resolvable:$true] %s174
          %s176 = sshll.u32 %s168, 4
          %s177 = int_to_ptr.vmem [resolvable:$true] %s176
          %179 = dma.hbm_to_vmem [thread:$0]  %s175, 112, %s177, %s165
        $region24: #{tpu_custom_call.1} parent=15 // pred_fallthru
          _
        // Predicated region
        $region25: #{tpu_custom_call.1} parent=15 // pred_check
          %p180 = pneg %p90
        $region26: #{tpu_custom_call.1} parent=15 // pred_check_branch
          %182 = sbr.rel (%p180) target = $region28
        $region27: #{tpu_custom_call.1} parent=15 // pred_region
          %s183 = sand.u32 %s18, 1
          %s184 = scalar_lea.sflag [#allocation6], %s183
          %s185 = sand.u32 %s80, 1
          %s186 = smul.addr %s185, 28
          %s187 = scalar_lea.vmem [#allocation7], %s186
          %s188 = smul.u32 7, %s18
          %190 = vsyncadd %s184, 0
          %s191 = smul.addr %s188, 4
          %s192 = scalar_lea.hbm %s2, %s191
          %s194 = sshll.u32 %s192, 4
          %s195 = int_to_ptr.hbm [resolvable:$true] %s194
          %s196 = sshll.u32 %s187, 4
          %s197 = int_to_ptr.vmem [resolvable:$true] %s196
          %199 = dma.hbm_to_vmem [thread:$0]  %s195, 448, %s197, %s184
        $region28: #{tpu_custom_call.1} parent=15 // pred_fallthru
          _
      $region16: #{tpu_custom_call.1} parent=5 // pred_fallthru
        _
      %p200 = scmp.le.s32.totalorder 1, %s18
      %p201 = scmp.lt.s32.totalorder %s18, 3
      %p202 = pnand %p200, %p201
      %p203 = pneg %p202
      // Predicated region
      $region29: #{tpu_custom_call.1} parent=5 // pred_check
        _
      $region30: #{tpu_custom_call.1} parent=5 // pred_check_branch
        %205 = sbr.rel (%p202) target = $region32
      $region31: #{tpu_custom_call.1} parent=5 // pred_region
        %s206 = ssub.s32 %s18, 1
        %s207 = sand.u32 %s31, 1
        %s208 = scalar_lea.sflag [#allocation3], %s207
        %s209 = sand.u32 %s31, 1
        %s210 = smul.addr %s209, 28
        %s211 = scalar_lea.vmem [#allocation2], %s210
        // Predicated region
        $region33: #{tpu_custom_call.1} parent=31 // pred_check
          %p212 = pneg %p44
        $region34: #{tpu_custom_call.1} parent=31 // pred_check_branch
          %214 = sbr.rel (%p212) target = $region36
        $region35: #{tpu_custom_call.1} parent=31 // pred_region
          %216 = dma.done %s208, 448
        $region36: #{tpu_custom_call.1} parent=31 // pred_fallthru
          _
        %s217 = sand.u32 %s23, 1
        %s218 = scalar_lea.sflag [#allocation6], %s217
        %s219 = sand.u32 %s57, 1
        %s220 = smul.addr %s219, 7
        %s221 = scalar_lea.vmem [#allocation5], %s220
        // Predicated region
        $region37: #{tpu_custom_call.1} parent=31 // pred_check
          %p222 = pneg %p70
        $region38: #{tpu_custom_call.1} parent=31 // pred_check_branch
          %224 = sbr.rel (%p222) target = $region40
        $region39: #{tpu_custom_call.1} parent=31 // pred_region
          %226 = dma.done %s218, 112
        $region40: #{tpu_custom_call.1} parent=31 // pred_fallthru
          _
        %s227 = sand.u32 %s23, 1
        %s228 = scalar_lea.sflag [#allocation6], %s227
        %s229 = sand.u32 %s83, 1
        %s230 = smul.addr %s229, 28
        %s231 = scalar_lea.vmem [#allocation7], %s230
        // Predicated region
        $region41: #{tpu_custom_call.1} parent=31 // pred_check
          %p232 = pneg %p96
        $region42: #{tpu_custom_call.1} parent=31 // pred_check_branch
          %234 = sbr.rel (%p232) target = $region44
        $region43: #{tpu_custom_call.1} parent=31 // pred_region
          %236 = dma.done %s228, 448
        $region44: #{tpu_custom_call.1} parent=31 // pred_fallthru
          _
        %s237 = sand.u32 %s31, 1
        %s238 = scalar_lea.sflag [#allocation3], %s237
        %s239 = sand.u32 %s31, 1
        %s240 = smul.addr %s239, 28
        %s241 = scalar_lea.vmem [#allocation2], %s240
        %p242 = pneg %p44
        %p243 = pneg %p41
        %s244 = sand.u32 %s23, 1
        %s245 = scalar_lea.sflag [#allocation6], %s244
        %s246 = sand.u32 %s57, 1
        %s247 = smul.addr %s246, 7
        %s248 = scalar_lea.vmem [#allocation5], %s247
        %p249 = pneg %p70
        %p250 = pneg %p67
        %s251 = sand.u32 %s23, 1
        %s252 = scalar_lea.sflag [#allocation6], %s251
        %s253 = sand.u32 %s83, 1
        %s254 = smul.addr %s253, 28
        %s255 = scalar_lea.vmem [#allocation7], %s254
        %p256 = pneg %p96
        %p257 = pneg %p93
        %p258 = pneg %p122
        %p259 = pneg %p119
        %s260 = sand.u32 %s109, 1
        %s261 = scalar_lea.sflag [#allocation4], %s260
        %s262 = sand.u32 %s109, 1
        %s263 = smul.addr %s262, 28
        %s264 = scalar_lea.vmem [#allocation8], %s263
        %s265 = smul.u32 7, %s23
        %s266 = smul.u32 7, %s23
        %s267 = smul.u32 7, %s23
        %s268 = smul.u32 7, %s23
        %v269 = vld [vmem:[%s211] sm:$0xff]
        %v270 = vld [vmem:[%s211 + $0x8] sm:$0xff]
        %v271 = vld [vmem:[%s211 + $0x10] sm:$0xff]
        %v272 = vld [vmem:[%s211 + $0x18] sm:$0xf]
        %v273 = vxor.u32 %v269, 2147483648
        %v274 = vxor.u32 %v270, 2147483648
        %v275 = vxor.u32 %v271, 2147483648
        %v276 = vxor.u32 %v272, 2147483648
        %v277 = vmul.f32 %v273, 1.442695
        %v278 = vpow.pop %v277
        %v279 = vmul.f32 %v274, 1.442695
        %v280 = vpow.pop %v279
        %v281 = vmul.f32 %v275, 1.442695
        %v282 = vpow.pop %v281
        %v283 = vmul.f32 %v276, 1.442695
        %v284 = vpow.pop %v283
        %v285 = vadd.f32 %v278, 1.0
        %v286 = vadd.f32 %v280, 1.0
        %v287 = vadd.f32 %v282, 1.0
        %v288 = vadd.f32 %v284, 1.0
        %v289 = vrcp.pop %v285
        %v290 = vmul.f32 %v285, %v289
        %v291 = vsub.f32 1.0, %v290
        %v292 = vmul.f32 %v289, %v291
        %v293 = vadd.f32 %v289, %v292
        %vm294 = vweird.f32 %v285
        %vm295 = vweird.f32 %v289
        %vm296 = vmor %vm294, %vm295
        %v297 = vsel %vm296, %v289, %v293
        %v298 = vand.u32 2147483647, %v285
        %vm299 = vcmp.eq.f32.partialorder %v298, 8.507059e+37
        %v300 = vand.u32 %v285, 2147483648
        %v301 = vor.u32 1.1754944e-38, %v300
        %v302 = vsel %vm299, %v301, %v297
        %v303 = vmul.f32 1.0, %v302
        %v304 = vrcp.pop %v286
        %v305 = vmul.f32 %v286, %v304
        %v306 = vsub.f32 1.0, %v305
        %v307 = vmul.f32 %v304, %v306
        %v308 = vadd.f32 %v304, %v307
        %vm309 = vweird.f32 %v286
        %vm310 = vweird.f32 %v304
        %vm311 = vmor %vm309, %vm310
        %v312 = vsel %vm311, %v304, %v308
        %v313 = vand.u32 2147483647, %v286
        %vm314 = vcmp.eq.f32.partialorder %v313, 8.507059e+37
        %v315 = vand.u32 %v286, 2147483648
        %v316 = vor.u32 1.1754944e-38, %v315
        %v317 = vsel %vm314, %v316, %v312
        %v318 = vmul.f32 1.0, %v317
        %v319 = vrcp.pop %v287
        %v320 = vmul.f32 %v287, %v319
        %v321 = vsub.f32 1.0, %v320
        %v322 = vmul.f32 %v319, %v321
        %v323 = vadd.f32 %v319, %v322
        %vm324 = vweird.f32 %v287
        %vm325 = vweird.f32 %v319
        %vm326 = vmor %vm324, %vm325
        %v327 = vsel %vm326, %v319, %v323
        %v328 = vand.u32 2147483647, %v287
        %vm329 = vcmp.eq.f32.partialorder %v328, 8.507059e+37
        %v330 = vand.u32 %v287, 2147483648
        %v331 = vor.u32 1.1754944e-38, %v330
        %v332 = vsel %vm329, %v331, %v327
        %v333 = vmul.f32 1.0, %v332
        %v334 = vrcp.pop %v288
        %v335 = vmul.f32 %v288, %v334
        %v336 = vsub.f32 1.0, %v335
        %v337 = vmul.f32 %v334, %v336
        %v338 = vadd.f32 %v334, %v337
        %vm339 = vweird.f32 %v288
        %vm340 = vweird.f32 %v334
        %vm341 = vmor %vm339, %vm340
        %v342 = vsel %vm341, %v334, %v338
        %v343 = vand.u32 2147483647, %v288
        %vm344 = vcmp.eq.f32.partialorder %v343, 8.507059e+37
        %v345 = vand.u32 %v288, 2147483648
        %v346 = vor.u32 1.1754944e-38, %v345
        %v347 = vsel %vm344, %v346, %v342
        %v348 = vmul.f32 1.0, %v347
        %v349 = vld [vmem:[%s221] sm:$0xff]
        %v350 = vxor.u32 %v349, 2147483648
        %v351 = vmul.f32 %v350, 1.442695
        %v352 = vpow.pop %v351
        %v353 = vadd.f32 %v352, 1.0
        %v354 = vrcp.pop %v353
        %v355 = vmul.f32 %v353, %v354
        %v356 = vsub.f32 1.0, %v355
        %v357 = vmul.f32 %v354, %v356
        %v358 = vadd.f32 %v354, %v357
        %vm359 = vweird.f32 %v353
        %vm360 = vweird.f32 %v354
        %vm361 = vmor %vm359, %vm360
        %v362 = vsel %vm361, %v354, %v358
        %v363 = vand.u32 2147483647, %v353
        %vm364 = vcmp.eq.f32.partialorder %v363, 8.507059e+37
        %v365 = vand.u32 %v353, 2147483648
        %v366 = vor.u32 1.1754944e-38, %v365
        %v367 = vsel %vm364, %v366, %v362
        %v368 = vmul.f32 1.0, %v367
        %v373 = vrot.slane %v303, 7
        %v374 = vrot.slane %v318, 7
        %v375 = vrot.slane %v333, 7
        %v376 = vrot.slane %v348, 7
        %vm381 = vcmp.gt.f32.partialorder %v303, %v373
        %vm382 = vcmp.gt.f32.partialorder %v318, %v374
        %vm383 = vcmp.gt.f32.partialorder %v333, %v375
        %vm384 = vcmp.gt.f32.partialorder %v348, %v376
        %v385 = vsel %vm381, %v303, %v373
        %v386 = vsel %vm382, %v318, %v374
        %v387 = vsel %vm383, %v333, %v375
        %v388 = vsel %vm384, %v348, %v376
        %v389 = vsel %vm381, 1.0, 0.0
        %v390 = vsel %vm382, 1.0, 0.0
        %v391 = vsel %vm383, 1.0, 0.0
        %v392 = vsel %vm384, 1.0, 0.0
        %v397 = vrot.slane %v385, 7
        %v398 = vrot.slane %v386, 7
        %v399 = vrot.slane %v387, 7
        %v400 = vrot.slane %v388, 7
        %vm405 = vcmp.gt.f32.partialorder %v303, %v397
        %vm406 = vcmp.gt.f32.partialorder %v318, %v398
        %vm407 = vcmp.gt.f32.partialorder %v333, %v399
        %vm408 = vcmp.gt.f32.partialorder %v348, %v400
        %v409 = vsel %vm405, %v303, %v397
        %v410 = vsel %vm406, %v318, %v398
        %v411 = vsel %vm407, %v333, %v399
        %v412 = vsel %vm408, %v348, %v400
        %v417 = vrot.slane %v389, 7
        %v418 = vrot.slane %v390, 7
        %v419 = vrot.slane %v391, 7
        %v420 = vrot.slane %v392, 7
        %v425 = vsel %vm405, 2.0, %v417
        %v426 = vsel %vm406, 2.0, %v418
        %v427 = vsel %vm407, 2.0, %v419
        %v428 = vsel %vm408, 2.0, %v420
        %v433 = vrot.slane %v409, 7
        %v434 = vrot.slane %v410, 7
        %v435 = vrot.slane %v411, 7
        %v436 = vrot.slane %v412, 7
        %vm441 = vcmp.gt.f32.partialorder %v303, %v433
        %vm442 = vcmp.gt.f32.partialorder %v318, %v434
        %vm443 = vcmp.gt.f32.partialorder %v333, %v435
        %vm444 = vcmp.gt.f32.partialorder %v348, %v436
        %v445 = vsel %vm441, %v303, %v433
        %v446 = vsel %vm442, %v318, %v434
        %v447 = vsel %vm443, %v333, %v435
        %v448 = vsel %vm444, %v348, %v436
        %v453 = vrot.slane %v425, 7
        %v454 = vrot.slane %v426, 7
        %v455 = vrot.slane %v427, 7
        %v456 = vrot.slane %v428, 7
        %v461 = vsel %vm441, 3.0, %v453
        %v462 = vsel %vm442, 3.0, %v454
        %v463 = vsel %vm443, 3.0, %v455
        %v464 = vsel %vm444, 3.0, %v456
        %v465 = vld [vmem:[%s231] sm:$0xff]
        %v466 = vld [vmem:[%s231 + $0x8] sm:$0xff]
        %v467 = vld [vmem:[%s231 + $0x10] sm:$0xff]
        %v468 = vld [vmem:[%s231 + $0x18] sm:$0xf]
        %vm469 = vcmp.gt.f32.partialorder %v465, 0.0
        %vm470 = vcmp.gt.f32.partialorder %v466, 0.0
        %vm471 = vcmp.gt.f32.partialorder %v467, 0.0
        %vm472 = vcmp.gt.f32.partialorder %v468, 0.0
        %v473 = vsel %vm469, 1, 0
        %v474 = vsel %vm470, 1, 0
        %v475 = vsel %vm471, 1, 0
        %v476 = vsel %vm472, 1, 0
        %v477 = vcvt.s32.f32 %v473
        %v478 = vcvt.s32.f32 %v474
        %v479 = vcvt.s32.f32 %v475
        %v480 = vcvt.s32.f32 %v476
        %v481 = vmul.f32 %v477, 2.0
        %v482 = vmul.f32 %v478, 2.0
        %v483 = vmul.f32 %v479, 2.0
        %v484 = vmul.f32 %v480, 2.0
        %v489 = vrot.slane %v481, 5
        %v490 = vrot.slane %v489, 4
        %v491 = vrot.slane %v482, 5
        %v492 = vrot.slane %v491, 4
        %v493 = vrot.slane %v483, 5
        %v494 = vrot.slane %v493, 4
        %v495 = vrot.slane %v484, 5
        %v496 = vrot.slane %v495, 4
        %v501 = vadd.f32 %v477, %v490
        %v502 = vadd.f32 %v478, %v492
        %v503 = vadd.f32 %v479, %v494
        %v504 = vadd.f32 %v480, %v496
        %v505 = vmul.f32 %v477, 4.0
        %v506 = vmul.f32 %v478, 4.0
        %v507 = vmul.f32 %v479, 4.0
        %v508 = vmul.f32 %v480, 4.0
        %v513 = vrot.slane %v505, 6
        %v514 = vrot.slane %v513, 4
        %v515 = vrot.slane %v506, 6
        %v516 = vrot.slane %v515, 4
        %v517 = vrot.slane %v507, 6
        %v518 = vrot.slane %v517, 4
        %v519 = vrot.slane %v508, 6
        %v520 = vrot.slane %v519, 4
        %v525 = vadd.f32 %v501, %v514
        %v526 = vadd.f32 %v502, %v516
        %v527 = vadd.f32 %v503, %v518
        %v528 = vadd.f32 %v504, %v520
        %v529 = vmul.f32 %v477, 8.0
        %v530 = vmul.f32 %v478, 8.0
        %v531 = vmul.f32 %v479, 8.0
        %v532 = vmul.f32 %v480, 8.0
        %v537 = vrot.slane %v529, 7
        %v538 = vrot.slane %v537, 4
        %v539 = vrot.slane %v530, 7
        %v540 = vrot.slane %v539, 4
        %v541 = vrot.slane %v531, 7
        %v542 = vrot.slane %v541, 4
        %v543 = vrot.slane %v532, 7
        %v544 = vrot.slane %v543, 4
        %v549 = vadd.f32 %v525, %v538
        %v550 = vadd.f32 %v526, %v540
        %v551 = vadd.f32 %v527, %v542
        %v552 = vadd.f32 %v528, %v544
        %v555 = vunpack.c.l.s4 286326784
        %v556 = vunpack.c.0.s8 %v555
        %v557 = vperm.slane %v368, %v556
        %v559 = vunpack.c.l.s4 858989090
        %v560 = vunpack.c.0.s8 %v559
        %v561 = vperm.slane %v368, %v560
        %v563 = vunpack.c.l.s4 1431651396
        %v564 = vunpack.c.0.s8 %v563
        %v565 = vperm.slane %v368, %v564
        %v567 = vunpack.c.l.s4 2004313702
        %v568 = vunpack.c.0.s8 %v567
        %v569 = vperm.slane %v368, %v568
        %v574 = vmul.f32 %v445, %v557
        %v575 = vmul.f32 %v446, %v561
        %v576 = vmul.f32 %v447, %v565
        %v577 = vmul.f32 %v448, %v569
        %v578 = vrsqrt.pop %v574
        %v579 = vmul.f32 %v578, %v574
        %v580 = vmul.f32 %v579, %v578
        %v581 = vmul.f32 0.5, %v580
        %v582 = vsub.f32 1.5, %v581
        %v583 = vmul.f32 %v578, %v582
        %v584 = vmul.f32 %v574, %v583
        %vm585 = vcmp.eq.f32.partialorder %v574, inf
        %v586 = vsel %vm585, %v574, %v584
        %vm587 = vcmp.eq.f32.partialorder %v574, 0.0
        %v588 = vand.u32 %v574, 2147483648
        %v589 = vsel %vm587, %v588, %v586
        %v590 = vrsqrt.pop %v575
        %v591 = vmul.f32 %v590, %v575
        %v592 = vmul.f32 %v591, %v590
        %v593 = vmul.f32 0.5, %v592
        %v594 = vsub.f32 1.5, %v593
        %v595 = vmul.f32 %v590, %v594
        %v596 = vmul.f32 %v575, %v595
        %vm597 = vcmp.eq.f32.partialorder %v575, inf
        %v598 = vsel %vm597, %v575, %v596
        %vm599 = vcmp.eq.f32.partialorder %v575, 0.0
        %v600 = vand.u32 %v575, 2147483648
        %v601 = vsel %vm599, %v600, %v598
        %v602 = vrsqrt.pop %v576
        %v603 = vmul.f32 %v602, %v576
        %v604 = vmul.f32 %v603, %v602
        %v605 = vmul.f32 0.5, %v604
        %v606 = vsub.f32 1.5, %v605
        %v607 = vmul.f32 %v602, %v606
        %v608 = vmul.f32 %v576, %v607
        %vm609 = vcmp.eq.f32.partialorder %v576, inf
        %v610 = vsel %vm609, %v576, %v608
        %vm611 = vcmp.eq.f32.partialorder %v576, 0.0
        %v612 = vand.u32 %v576, 2147483648
        %v613 = vsel %vm611, %v612, %v610
        %v614 = vrsqrt.pop %v577
        %v615 = vmul.f32 %v614, %v577
        %v616 = vmul.f32 %v615, %v614
        %v617 = vmul.f32 0.5, %v616
        %v618 = vsub.f32 1.5, %v617
        %v619 = vmul.f32 %v614, %v618
        %v620 = vmul.f32 %v577, %v619
        %vm621 = vcmp.eq.f32.partialorder %v577, inf
        %v622 = vsel %vm621, %v577, %v620
        %vm623 = vcmp.eq.f32.partialorder %v577, 0.0
        %v624 = vand.u32 %v577, 2147483648
        %v625 = vsel %vm623, %v624, %v622
        %630 = vst [vmem:[#allocation1] sm:$0xff] %v589
        %631 = vst [vmem:[#allocation1 + $0x8] sm:$0xff] %v601
        %632 = vst [vmem:[#allocation1 + $0x10] sm:$0xff] %v613
        %633 = vst [vmem:[#allocation1 + $0x18] sm:$0xff] %v625
        %s634 = scalar_lea.vmem [#allocation1], 3
        %v635 = vld [vmem:[%s634] ss:$4 sm:$0xff]
        %v637 = vlaneseq
        %vm638 = vcmp.ge.s32.totalorder %v637, 0
        %vm639 = vcmp.lt.s32.totalorder %v637, 896
        %vm640 = vmand %vm638, %vm639
        %641 = vst.msk [vmem:[%s264] ss:$4 sm:$0x7f] %vm640, %v635
        %v642 = vadd.f32 %v461, 1.0
        %v643 = vadd.f32 %v462, 1.0
        %v644 = vadd.f32 %v463, 1.0
        %v645 = vadd.f32 %v464, 1.0
        %650 = vst [vmem:[#allocation1] sm:$0xff] %v642
        %651 = vst [vmem:[#allocation1 + $0x8] sm:$0xff] %v643
        %652 = vst [vmem:[#allocation1 + $0x10] sm:$0xff] %v644
        %653 = vst [vmem:[#allocation1 + $0x18] sm:$0xff] %v645
        %s654 = scalar_lea.vmem [#allocation1], 3
        %v655 = vld [vmem:[%s654] ss:$4 sm:$0xff]
        %s657 = scalar_lea.vmem %s264, 1 [#allocation8]
        %658 = vst.msk [vmem:[%s657] ss:$4 sm:$0x7f] %vm640, %v655
        %s659 = scalar_lea.vmem %s264, 2 [#allocation8]
        %660 = vst.msk [vmem:[%s659] ss:$4 sm:$0x7f] %vm640, %v368
        %v665 = vrot.slane %v549, 3
        %v666 = vrot.slane %v550, 6
        %v667 = vrot.slane %v550, 1
        %v668 = vrot.slane %v551, 4
        %v669 = vrot.slane %v551, 7
        %v670 = vrot.slane %v552, 2
        %v671 = vrot.slane %v552, 5
        %vm672 = vcmask 1040384
        %v673 = vsel %vm672, %v549, %v665
        %vm674 = vcmask 1042434
        %v675 = vsel %vm674, %v666, %v667
        %vm676 = vcmask 1041408
        %v677 = vsel %vm676, %v673, %v675
        %vm678 = vcmask 1044484
        %v679 = vsel %vm678, %v668, %v669
        %vm680 = vcmask 1046534
        %v681 = vsel %vm680, %v670, %v671
        %vm682 = vcmask 1045508
        %v683 = vsel %vm682, %v679, %v681
        %vm684 = vcmask 1043456
        %v685 = vsel %vm684, %v677, %v683
        %s687 = scalar_lea.vmem %s264, 3 [#allocation8]
        %688 = vst.msk [vmem:[%s687] ss:$4 sm:$0x7f] %vm640, %v685
        %s689 = sand.u32 %s109, 1
        %s690 = scalar_lea.sflag [#allocation4], %s689
        %s691 = sand.u32 %s109, 1
        %s692 = smul.addr %s691, 28
        %s693 = scalar_lea.vmem [#allocation8], %s692
        // Predicated region
        $region45: #{tpu_custom_call.1} parent=31 // pred_check
          %p694 = pneg %p119
        $region46: #{tpu_custom_call.1} parent=31 // pred_check_branch
          %696 = sbr.rel (%p694) target = $region48
        $region47: #{tpu_custom_call.1} parent=31 // pred_region
          %s697 = smul.u32 7, %s23
          %699 = vsyncadd %s690, 0
          %s700 = smul.addr %s697, 4
          %s701 = scalar_lea.hbm %s3, %s700
          %s703 = sshll.u32 %s693, 4
          %s704 = int_to_ptr.vmem [resolvable:$true] %s703
          %s705 = sshll.u32 %s701, 4
          %s706 = int_to_ptr.hbm [resolvable:$true] %s705
          %708 = dma.vmem_to_hbm [thread:$0]  %s704, 448, %s706, %s690
        $region48: #{tpu_custom_call.1} parent=31 // pred_fallthru
          _
      $region32: #{tpu_custom_call.1} parent=5 // pred_fallthru
        _
      %p709 = scmp.le.s32.totalorder 2, %s18
      // Predicated region
      $region49: #{tpu_custom_call.1} parent=5 // pred_check
        %p710 = pneg %p709
      $region50: #{tpu_custom_call.1} parent=5 // pred_check_branch
        %712 = sbr.rel (%p710) target = $region52
      $region51: #{tpu_custom_call.1} parent=5 // pred_region
        %s713 = ssub.s32 %s18, 2
        // Predicated region
        $region53: #{tpu_custom_call.1} parent=51 // pred_check
          %p714 = pneg %p125
        $region54: #{tpu_custom_call.1} parent=51 // pred_check_branch
          %716 = sbr.rel (%p714) target = $region56
        $region55: #{tpu_custom_call.1} parent=51 // pred_region
          %s717 = sand.u32 %s110, 1
          %s718 = scalar_lea.sflag [#allocation4], %s717
          %s719 = sand.u32 %s110, 1
          %s720 = smul.addr %s719, 28
          %s721 = scalar_lea.vmem [#allocation8], %s720
          %723 = dma.done %s718, 448
        $region56: #{tpu_custom_call.1} parent=51 // pred_fallthru
          _
      $region52: #{tpu_custom_call.1} parent=5 // pred_fallthru
        _
    $region6: #{tpu_custom_call.1} parent=1 // loop_footer
      %s22 = sadd.s32 1, %s18
    $region7: #{tpu_custom_call.1} parent=1 // loop_footer_branch
      %17 = sbr.rel target = $region3
    $region8: #{tpu_custom_call.1} parent=1 // loop_exit
      _
    %724 = vsyncpa [#allocation3], 1
    %s725 = scalar_lea.sflag [#allocation3], 1
    %726 = vsyncpa %s725, 1
    %727 = vsyncpa [#allocation6], 1
    %s728 = scalar_lea.sflag [#allocation6], 1
    %729 = vsyncpa %s728, 1
    %730 = vsyncpa [#allocation4], 1
    %s731 = scalar_lea.sflag [#allocation4], 1
    %732 = vsyncpa %s731, 1

</llo_original>
